<compile_context>
chip_gen: v5e
topology: v5e:2x2
jax: 0.10.0
libtpu: 0.0.40
codegen_flags: <defaults>
</compile_context>

<pallas_src>
import jax
import jax.numpy as jnp
from jax.experimental import pallas as pl
from jax.experimental.pallas import tpu as pltpu


def spatial_attn_kernel(w_ref, x_ref, o_ref):
    # w_ref: SMEM (2,) f32  -- [w_avg / C, w_max]  (mean scale pre-folded)
    # x_ref: VMEM (C, TL)   -- one lane tile of one batch row
    # o_ref: VMEM (1, TL)
    x = x_ref[...]                                             # (C, TL), input dtype
    s = jnp.sum(x, axis=0, keepdims=True, dtype=jnp.float32)   # channel-sum, f32 acc
    mx = jnp.max(x, axis=0, keepdims=True).astype(jnp.float32) # channel-max
    y = w_ref[0] * s + w_ref[1] * mx                           # conv1d(k=1, no bias)
    o_ref[...] = jax.nn.sigmoid(y).astype(o_ref.dtype)


def _pick_lane_tile(L, target):
    """Largest multiple of 128 that divides L and is <= target; else full L."""
    if L % 128 != 0 or L < 128:
        return L  # full-dim exemption from the (8,128) rule
    tl = min(target, L)
    tl -= tl % 128
    while L % tl != 0:
        tl -= 128
    return tl


def spatial_attention(x, w, *, lane_tile=2048):
    """x: (N, C, L), w: (2,) float32 = flattened Conv1d(2,1,1) weight."""
    N, C, L = x.shape
    TL = _pick_lane_tile(L, lane_tile)
    grid = (N, L // TL)

    # Fold the mean's 1/C into the avg-branch weight on the host (free).
    w_scaled = jnp.stack([w[0] / jnp.float32(C), w[1]]).astype(jnp.float32)

    # Explicit VMEM budget with headroom: double-buffered input + output tiles.
    itemsize = jnp.dtype(x.dtype).itemsize
    tile_bytes = 2 * C * TL * itemsize + 2 * TL * 4
    vmem_limit = max(2 * tile_bytes + (1 << 20), 16 << 20)

    return pl.pallas_call(
        spatial_attn_kernel,
        out_shape=jax.ShapeDtypeStruct((N, 1, L), x.dtype),
        grid=grid,
        in_specs=[
            pl.BlockSpec(memory_space=pltpu.SMEM),            # (2,) scalar weights
            pl.BlockSpec((pl.Squeezed(), C, TL),              # kernel sees (C, TL)
                         lambda n, l: (n, 0, l)),
        ],
        out_specs=pl.BlockSpec((pl.Squeezed(), 1, TL),        # kernel sees (1, TL)
                               lambda n, l: (n, 0, l)),
        compiler_params=pltpu.CompilerParams(
            dimension_semantics=("parallel", "parallel"),
            vmem_limit_bytes=int(vmem_limit)),
    )(w_scaled, x)


if __name__ == "__main__":
    key = jax.random.PRNGKey(0)
    kx, kw = jax.random.split(key)

    # Small NCL input; L chosen so the lane-tiling path (TL=128, 4 tiles) runs.
    N, C, L = 2, 4, 512
    x = jax.random.normal(kx, (N, C, L), dtype=jnp.float32)

    # Deterministic kaiming_normal_ init for Conv1d(2, 1, 1) weight:
    # fan_in = in_channels * kernel_size = 2, gain = sqrt(2) -> std = 1.0
    fan_in = 2 * 1
    std = (2.0 / fan_in) ** 0.5
    w_full = jax.random.normal(kw, (1, 2, 1), dtype=jnp.float32) * std
    w = w_full.reshape(2)

    out = spatial_attention(x, w, lane_tile=128)
    out = jax.block_until_ready(out)

    # Pure-JAX reference for correctness.
    ref = jax.nn.sigmoid(
        w[0] * jnp.mean(x, axis=1, keepdims=True)
        + w[1] * jnp.max(x, axis=1, keepdims=True)
    )
    assert out.shape == (N, 1, L)
    assert jnp.allclose(out, ref, atol=1e-5), "mismatch vs reference"

    print("KERNEL_OK")
</pallas_src>

<mosaic_0001>
module attributes {stable_mosaic.version = 11 : i64} {
  func.func @spatial_attn_kernel(%arg0: i32, %arg1: i32, %arg2: memref<2xf32, #tpu.memory_space<smem>>, %arg3: memref<1x4x128xf32, #tpu.memory_space<vmem>>, %arg4: memref<1x1x128xf32, #tpu.memory_space<vmem>>) attributes {dimension_semantics = [#tpu.dimension_semantics<parallel>, #tpu.dimension_semantics<parallel>], iteration_bounds = array<i64: 2, 4>, scalar_prefetch = 0 : i64, scratch_operands = 0 : i64, tpu.core_type = #tpu.core_type<tc>, window_params = [{transform_indices = @transform_0, window_bounds = array<i64: 2>}, {transform_indices = @transform_1, window_bounds = array<i64: 1, 4, 128>}, {transform_indices = @transform_2, window_bounds = array<i64: 1, 1, 128>}]} {
    %c0 = arith.constant 0 : index
    %c0_0 = arith.constant 0 : index
    %c0_1 = arith.constant 0 : index
    %0 = vector.load %arg3[%c0, %c0_0, %c0_1] : memref<1x4x128xf32, #tpu.memory_space<vmem>>, vector<1x4x128xf32>
    %1 = vector.shape_cast %0 : vector<1x4x128xf32> to vector<4x128xf32>
    %cst = arith.constant dense<0.000000e+00> : vector<128xf32>
    %2 = vector.multi_reduction <add>, %1, %cst [0] : vector<4x128xf32> to vector<128xf32>
    %3 = vector.shape_cast %2 : vector<128xf32> to vector<1x128xf32>
    %cst_2 = arith.constant dense<0xFF800000> : vector<128xf32>
    %4 = vector.multi_reduction <maximumf>, %1, %cst_2 [0] : vector<4x128xf32> to vector<128xf32>
    %5 = vector.shape_cast %4 : vector<128xf32> to vector<1x128xf32>
    %c0_3 = arith.constant 0 : index
    %6 = memref.load %arg2[%c0_3] : memref<2xf32, #tpu.memory_space<smem>>
    %7 = vector.broadcast %6 : f32 to vector<1x128xf32>
    %8 = arith.mulf %7, %3 : vector<1x128xf32>
    %c1 = arith.constant 1 : index
    %9 = memref.load %arg2[%c1] : memref<2xf32, #tpu.memory_space<smem>>
    %10 = vector.broadcast %9 : f32 to vector<1x128xf32>
    %11 = arith.mulf %10, %5 : vector<1x128xf32>
    %12 = arith.addf %8, %11 : vector<1x128xf32>
    %13 = arith.negf %12 : vector<1x128xf32>
    %14 = math.exp %13 : vector<1x128xf32>
    %cst_4 = arith.constant 1.000000e+00 : f32
    %15 = vector.broadcast %cst_4 : f32 to vector<1x128xf32>
    %16 = arith.addf %15, %14 : vector<1x128xf32>
    %17 = arith.divf %15, %16 : vector<1x128xf32>
    %c0_5 = arith.constant 0 : index
    %c0_6 = arith.constant 0 : index
    %c0_7 = arith.constant 0 : index
    %18 = vector.load %arg4[%c0_5, %c0_6, %c0_7] : memref<1x1x128xf32, #tpu.memory_space<vmem>>, vector<1x1x128xf32>
    %19 = vector.shape_cast %18 : vector<1x1x128xf32> to vector<1x128xf32>
    %20 = vector.shape_cast %17 : vector<1x128xf32> to vector<1x1x128xf32>
    tpu.vector_store %arg4[%c0_5, %c0_6, %c0_7], %20 {strides = array<i32>} : memref<1x1x128xf32, #tpu.memory_space<vmem>>, vector<1x1x128xf32>,
    return
  }
  func.func @transform_0(%arg0: i32, %arg1: i32) -> i32 {
    %c0_i32 = arith.constant 0 : i32
    %c0_i32_0 = arith.constant 0 : i32
    return %c0_i32 : i32
  }
  func.func @transform_1(%arg0: i32, %arg1: i32) -> (i32, i32, i32) {
    %c0_i32 = arith.constant 0 : i32
    %c0_i32_0 = arith.constant 0 : i32
    return %arg0, %c0_i32, %arg1 : i32, i32, i32
  }
  func.func @transform_2(%arg0: i32, %arg1: i32) -> (i32, i32, i32) {
    %c0_i32 = arith.constant 0 : i32
    %c0_i32_0 = arith.constant 0 : i32
    return %arg0, %c0_i32, %arg1 : i32, i32, i32
  }
}

</mosaic_0001>

<llo_original>
// kernel: tpu_custom_call.1
$region0: #{tpu_custom_call.1}
  #allocation0 [shape = 'u32[]', space=smem, size = 0x4, offset = 0x4, fixed_abs, tag = 'smem constant byte address 0x4 - core index']
  #allocation1 [shape = 'u32[72,128]{1,0:T(1,128)}', space=vmem, size = 0x9000, scoped, tag = 'internal scratch']
  %s0 = inlined_call_operand.hbm [shape: f32[2], index: 0, kind: input, shape index: {}]
  %s1 = inlined_call_operand.hbm [shape: f32[2,4,512], index: 1, kind: input, shape index: {}]
  %s2 = inlined_call_operand.hbm [shape: f32[2,1,512], index: 2, kind: output, shape index: {}]
  %s3 = sld [smem:[#allocation0]]
  $region49: #{tpu_custom_call.1} parent=0
    _
  %s5 = ssub.s32 1, %s3
  %s6 = scalar_select 0, %s5, %s3
  $region1: #{tpu_custom_call.1} parent=0
    #allocation2 [shape = 'u8[512]{0}', space=smem, size = 0x200, scoped, tag = 'input window, operand 0, single buffered']
    #allocation3 [shape = 's32[2]{0}', space=sflag, size = 0x8, scoped, tag = 'scoped memory for tpu_custom_call.1']
    #allocation4 [shape = 's32[2]{0}', space=sflag, size = 0x8, scoped, tag = 'scoped memory for tpu_custom_call.1']
    #allocation5 [shape = 's32[2]{0}', space=sflag, size = 0x8, scoped, tag = 'scoped memory for tpu_custom_call.1']
    #allocation6 [shape = 'u8[4096]{0}', space=vmem, size = 0x1000, scoped, tag = 'input window, operand 1']
    #allocation7 [shape = 'u8[1024]{0}', space=vmem, size = 0x400, scoped, tag = 'output window, operand 0']
    %7 = vsyncpa [#allocation5], 0
    %8 = vsyncpa [#allocation3], 0
    %s9 = scalar_lea.sflag [#allocation3], 1
    %10 = vsyncpa %s9, 0
    %11 = vsyncpa [#allocation4], 0
    %s12 = scalar_lea.sflag [#allocation4], 1
    %13 = vsyncpa %s12, 0
    loop: start=0, step=1, limit=10
    $region2: #{tpu_custom_call.1} parent=1 // loop_pre_header
      _
    $region3: #{tpu_custom_call.1} parent=1 // loop_header
      %s15 = sphi 0, %s19
      %p16 = scmp.ge.s32.totalorder %s15, 10
      %s22 = sphi 0, %s34
      %s23 = sphi 0, %s30
      %s24 = sphi 0, %s22
      %s25 = sphi 0, %s23
      %s26 = sphi 0, %s24
      %s27 = sphi 0, %s25
      %s35 = sphi 0, %s35
      %s37 = sphi 0, %s35
      %s38 = sphi 0, %s37
      %s52 = sphi 0, %s38
      %s60 = sphi 0, %s62
      %s63 = sphi 0, %s60
      %s64 = sphi 0, %s63
      %s80 = sphi 0, %s64
      %s88 = sphi 0, %s90
      %s91 = sphi 0, %s88
      %s92 = sphi 0, %s91
      %s108 = sphi 0, %s92
    $region4: #{tpu_custom_call.1} parent=1 // loop_header_branch
      %18 = sbr.rel (%p16) target = $region8
    $region5: #{tpu_custom_call.1} parent=1 // loop_body
      %s20 = ssub.s32 %s15, 1
      %s21 = ssub.s32 %s15, 2
      %s28 = sadd.s32 1, %s23
      %p29 = scmp.ge.s32.totalorder %s28, 4
      %s30 = scalar_select %p29, 0, %s28
      %s31 = sadd.s32 1, %s22
      %s32 = scalar_select %p29, %s31, %s22
      %p33 = scmp.ge.s32.totalorder %s32, 2
      %s34 = scalar_select %p33, 0, %s32
      %s36 = sadd.s32 %s35, 1
      %p39 = scmp.eq.s32.totalorder %s15, 7
      %p40 = scmp.ne.s32.totalorder %s35, %s37
      %p41 = scmp.eq.s32.totalorder %s15, 0
      %p42 = por %p40, %p41
      %p43 = scmp.ne.s32.totalorder %s35, %s37
      %p44 = scmp.eq.s32.totalorder %s20, 7
      %p45 = por %p43, %p44
      %p46 = scmp.ne.s32.totalorder %s37, %s38
      %p47 = scmp.eq.s32.totalorder %s20, 0
      %p48 = por %p46, %p47
      %p49 = scmp.ne.s32.totalorder %s37, %s38
      %p50 = scmp.eq.s32.totalorder %s21, 7
      %p51 = por %p49, %p50
      %p53 = scmp.ne.s32.totalorder %s38, %s52
      %p54 = scmp.eq.s32.totalorder %s21, 0
      %p55 = por %p53, %p54
      %s56 = ssub.s32 %s22, %s34
      %s57 = ssub.s32 %s23, %s30
      %s58 = sor.u32 %s56, %s57
      %p59 = scmp.eq.s32.totalorder %s58, 0
      %s61 = sadd.s32 %s60, 1
      %s62 = scalar_select %p59, %s60, %s61
      %p65 = pneg %p59
      %p66 = scmp.eq.s32.totalorder %s15, 7
      %p67 = por %p65, %p66
      %p68 = scmp.ne.s32.totalorder %s60, %s63
      %p69 = scmp.eq.s32.totalorder %s15, 0
      %p70 = por %p68, %p69
      %p71 = scmp.ne.s32.totalorder %s60, %s63
      %p72 = scmp.eq.s32.totalorder %s20, 7
      %p73 = por %p71, %p72
      %p74 = scmp.ne.s32.totalorder %s63, %s64
      %p75 = scmp.eq.s32.totalorder %s20, 0
      %p76 = por %p74, %p75
      %p77 = scmp.ne.s32.totalorder %s63, %s64
      %p78 = scmp.eq.s32.totalorder %s21, 7
      %p79 = por %p77, %p78
      %p81 = scmp.ne.s32.totalorder %s64, %s80
      %p82 = scmp.eq.s32.totalorder %s21, 0
      %p83 = por %p81, %p82
      %s84 = ssub.s32 %s22, %s34
      %s85 = ssub.s32 %s23, %s30
      %s86 = sor.u32 %s84, %s85
      %p87 = scmp.eq.s32.totalorder %s86, 0
      %s89 = sadd.s32 %s88, 1
      %s90 = scalar_select %p87, %s88, %s89
      %p93 = pneg %p87
      %p94 = scmp.eq.s32.totalorder %s15, 7
      %p95 = por %p93, %p94
      %p96 = scmp.ne.s32.totalorder %s88, %s91
      %p97 = scmp.eq.s32.totalorder %s15, 0
      %p98 = por %p96, %p97
      %p99 = scmp.ne.s32.totalorder %s88, %s91
      %p100 = scmp.eq.s32.totalorder %s20, 7
      %p101 = por %p99, %p100
      %p102 = scmp.ne.s32.totalorder %s91, %s92
      %p103 = scmp.eq.s32.totalorder %s20, 0
      %p104 = por %p102, %p103
      %p105 = scmp.ne.s32.totalorder %s91, %s92
      %p106 = scmp.eq.s32.totalorder %s21, 7
      %p107 = por %p105, %p106
      %p109 = scmp.ne.s32.totalorder %s92, %s108
      %p110 = scmp.eq.s32.totalorder %s21, 0
      %p111 = por %p109, %p110
      %p112 = scmp.le.s32.totalorder 1, %s15
      %p113 = scmp.lt.s32.totalorder %s15, 9
      %p114 = pnand %p112, %p113
      %p115 = pneg %p114
      // Predicated region
      $region9: #{tpu_custom_call.1} parent=5 // pred_check
        _
      $region10: #{tpu_custom_call.1} parent=5 // pred_check_branch
        %117 = sbr.rel (%p114) target = $region12
      $region11: #{tpu_custom_call.1} parent=5 // pred_region
        %s118 = ssub.s32 %s15, 1
        // Predicated region
        $region13: #{tpu_custom_call.1} parent=11 // pred_check
          %p119 = pneg %p48
        $region14: #{tpu_custom_call.1} parent=11 // pred_check_branch
          %121 = sbr.rel (%p119) target = $region16
        $region15: #{tpu_custom_call.1} parent=11 // pred_region
          %123 = vsyncadd [#allocation5], 0
          %s125 = sshll.u32 %s0, 4
          %s126 = int_to_ptr.hbm [resolvable:$true] %s125
          %128 = dma.hbm_to_smem %s126, 16, [#allocation2], [#allocation5]
        $region16: #{tpu_custom_call.1} parent=11 // pred_fallthru
          _
      $region12: #{tpu_custom_call.1} parent=5 // pred_fallthru
        _
      %p129 = scmp.lt.s32.totalorder %s15, 8
      // Predicated region
      $region17: #{tpu_custom_call.1} parent=5 // pred_check
        %p130 = pneg %p129
      $region18: #{tpu_custom_call.1} parent=5 // pred_check_branch
        %132 = sbr.rel (%p130) target = $region20
      $region19: #{tpu_custom_call.1} parent=5 // pred_region
        // Predicated region
        $region21: #{tpu_custom_call.1} parent=19 // pred_check
          %p133 = pneg %p70
        $region22: #{tpu_custom_call.1} parent=19 // pred_check_branch
          %135 = sbr.rel (%p133) target = $region24
        $region23: #{tpu_custom_call.1} parent=19 // pred_region
          %s136 = sand.u32 %s60, 1
          %s137 = scalar_lea.sflag [#allocation3], %s136
          %s138 = sand.u32 %s60, 1
          %s139 = smul.addr %s138, 4
          %s140 = scalar_lea.vmem [#allocation6], %s139
          %142 = vsyncadd %s137, 0
          %s143 = smul.addr %s22, 4
          %s144 = sadd.s32 %s23, %s143
          %s145 = smul.addr %s144, 4
          %s146 = scalar_lea.hbm %s1, %s145
          %s148 = sshll.u32 %s146, 4
          %s149 = int_to_ptr.hbm [resolvable:$true] %s148
          %s150 = sshll.u32 %s140, 4
          %s151 = int_to_ptr.vmem [resolvable:$true] %s150
          %153 = dma.hbm_to_vmem [thread:$0]  %s149, 64, %s151, %s137
        $region24: #{tpu_custom_call.1} parent=19 // pred_fallthru
          _
      $region20: #{tpu_custom_call.1} parent=5 // pred_fallthru
        _
      %p154 = scmp.le.s32.totalorder 1, %s15
      %p155 = scmp.lt.s32.totalorder %s15, 9
      %p156 = pnand %p154, %p155
      %p157 = pneg %p156
      // Predicated region
      $region25: #{tpu_custom_call.1} parent=5 // pred_check
        _
      $region26: #{tpu_custom_call.1} parent=5 // pred_check_branch
        %159 = sbr.rel (%p156) target = $region28
      $region27: #{tpu_custom_call.1} parent=5 // pred_region
        %s160 = ssub.s32 %s15, 1
        // Predicated region
        $region29: #{tpu_custom_call.1} parent=27 // pred_check
          %p161 = pneg %p48
        $region30: #{tpu_custom_call.1} parent=27 // pred_check_branch
          %163 = sbr.rel (%p161) target = $region32
        $region31: #{tpu_custom_call.1} parent=27 // pred_region
          %165 = dma.done [#allocation5], 16
        $region32: #{tpu_custom_call.1} parent=27 // pred_fallthru
          _
        %s166 = sand.u32 %s63, 1
        %s167 = scalar_lea.sflag [#allocation3], %s166
        %s168 = sand.u32 %s63, 1
        %s169 = smul.addr %s168, 4
        %s170 = scalar_lea.vmem [#allocation6], %s169
        // Predicated region
        $region33: #{tpu_custom_call.1} parent=27 // pred_check
          %p171 = pneg %p76
        $region34: #{tpu_custom_call.1} parent=27 // pred_check_branch
          %173 = sbr.rel (%p171) target = $region36
        $region35: #{tpu_custom_call.1} parent=27 // pred_region
          %175 = dma.done %s167, 64
        $region36: #{tpu_custom_call.1} parent=27 // pred_fallthru
          _
        %176 = sfence
        %p177 = pneg %p48
        %p178 = pneg %p45
        %s179 = sand.u32 %s63, 1
        %s180 = scalar_lea.sflag [#allocation3], %s179
        %s181 = sand.u32 %s63, 1
        %s182 = smul.addr %s181, 4
        %s183 = scalar_lea.vmem [#allocation6], %s182
        %p184 = pneg %p76
        %p185 = pneg %p73
        %p186 = pneg %p104
        %p187 = pneg %p101
        %s188 = sand.u32 %s91, 1
        %s189 = scalar_lea.sflag [#allocation4], %s188
        %s190 = sand.u32 %s91, 1
        %s191 = scalar_lea.vmem [#allocation7], %s190
        %v192 = vld [vmem:[%s170] sm:$0xf]
        %vm193 = vcmask 1043456
        %v194 = vsel %vm193, %v192, 0.0
        %v195 = vrot.slane %v194, 4
        %v196 = vadd.f32 %v194, %v195
        %v197 = vrot.slane %v196, 2
        %v198 = vadd.f32 %v196, %v197
        %v199 = vrot.slane %v198, 1
        %v200 = vadd.f32 %v198, %v199
        %v201 = vsel %vm193, %v192, -inf
        %v202 = vrot.slane %v201, 4
        %v203 = vmax.f32 %v201, %v202
        %v204 = vrot.slane %v203, 2
        %v205 = vmax.f32 %v203, %v204
        %v206 = vrot.slane %v205, 1
        %v207 = vmax.f32 %v205, %v206
        %s208 = sld [smem:[#allocation2]]
        %v209 = vstv %s208
        %v210 = vmul.f32 %v209, %v200
        %s211 = sld [smem:[#allocation2 + $0x1]]
        %v212 = vstv %s211
        %v213 = vmul.f32 %v212, %v207
        %v214 = vadd.f32 %v210, %v213
        %v215 = vxor.u32 %v214, 2147483648
        %v216 = vmul.f32 %v215, 1.442695
        %v217 = vpow.pop %v216
        %v218 = vadd.f32 %v217, 1.0
        %v219 = vrcp.pop %v218
        %v220 = vmul.f32 %v218, %v219
        %v221 = vsub.f32 1.0, %v220
        %v222 = vmul.f32 %v219, %v221
        %v223 = vadd.f32 %v219, %v222
        %vm224 = vweird.f32 %v218
        %vm225 = vweird.f32 %v219
        %vm226 = vmor %vm224, %vm225
        %v227 = vsel %vm226, %v219, %v223
        %v228 = vand.u32 2147483647, %v218
        %vm229 = vcmp.eq.f32.partialorder %v228, 8.507059e+37
        %v230 = vand.u32 %v218, 2147483648
        %v231 = vor.u32 1.1754944e-38, %v230
        %v232 = vsel %vm229, %v231, %v227
        %v233 = vmul.f32 1.0, %v232
        %234 = vst [vmem:[%s191] sm:$0x1] %v233
        %s235 = sand.u32 %s91, 1
        %s236 = scalar_lea.sflag [#allocation4], %s235
        %s237 = sand.u32 %s91, 1
        %s238 = scalar_lea.vmem [#allocation7], %s237
        // Predicated region
        $region37: #{tpu_custom_call.1} parent=27 // pred_check
          %p239 = pneg %p101
        $region38: #{tpu_custom_call.1} parent=27 // pred_check_branch
          %241 = sbr.rel (%p239) target = $region40
        $region39: #{tpu_custom_call.1} parent=27 // pred_region
          %243 = vsyncadd %s236, 0
          %s244 = smul.addr %s24, 4
          %s245 = sadd.s32 %s25, %s244
          %s246 = scalar_lea.hbm %s2, %s245
          %s248 = sshll.u32 %s238, 4
          %s249 = int_to_ptr.vmem [resolvable:$true] %s248
          %s250 = sshll.u32 %s246, 4
          %s251 = int_to_ptr.hbm [resolvable:$true] %s250
          %253 = dma.vmem_to_hbm [thread:$0]  %s249, 16, %s251, %s236
        $region40: #{tpu_custom_call.1} parent=27 // pred_fallthru
          _
      $region28: #{tpu_custom_call.1} parent=5 // pred_fallthru
        _
      %p254 = scmp.le.s32.totalorder 2, %s15
      // Predicated region
      $region41: #{tpu_custom_call.1} parent=5 // pred_check
        %p255 = pneg %p254
      $region42: #{tpu_custom_call.1} parent=5 // pred_check_branch
        %257 = sbr.rel (%p255) target = $region44
      $region43: #{tpu_custom_call.1} parent=5 // pred_region
        %s258 = ssub.s32 %s15, 2
        // Predicated region
        $region45: #{tpu_custom_call.1} parent=43 // pred_check
          %p259 = pneg %p107
        $region46: #{tpu_custom_call.1} parent=43 // pred_check_branch
          %261 = sbr.rel (%p259) target = $region48
        $region47: #{tpu_custom_call.1} parent=43 // pred_region
          %s262 = sand.u32 %s92, 1
          %s263 = scalar_lea.sflag [#allocation4], %s262
          %s264 = sand.u32 %s92, 1
          %s265 = scalar_lea.vmem [#allocation7], %s264
          %267 = dma.done %s263, 16
        $region48: #{tpu_custom_call.1} parent=43 // pred_fallthru
          _
      $region44: #{tpu_custom_call.1} parent=5 // pred_fallthru
        _
    $region6: #{tpu_custom_call.1} parent=1 // loop_footer
      %s19 = sadd.s32 1, %s15
    $region7: #{tpu_custom_call.1} parent=1 // loop_footer_branch
      %14 = sbr.rel target = $region3
    $region8: #{tpu_custom_call.1} parent=1 // loop_exit
      _
    %268 = vsyncpa [#allocation3], 1
    %s269 = scalar_lea.sflag [#allocation3], 1
    %270 = vsyncpa %s269, 1
    %271 = vsyncpa [#allocation4], 1
    %s272 = scalar_lea.sflag [#allocation4], 1
    %273 = vsyncpa %s272, 1
    %274 = vsyncpa [#allocation5], 1
    %s275 = scalar_lea.sflag [#allocation5], 1
    %276 = vsyncpa %s275, 1

</llo_original>
